<compile_context>
chip_gen: v6e
topology: v6e:2x2x1
jax: 0.10.0
libtpu: 0.0.40
codegen_flags: <defaults>
</compile_context>

<pallas_src>
import jax
import jax.numpy as jnp
from jax.experimental import pallas as pl
from jax.experimental.pallas import tpu as pltpu


def _round_up(x, m):
    return ((x + m - 1) // m) * m


def _device_kind():
    try:
        return jax.devices()[0].device_kind.lower()
    except Exception:
        return ""


def _vmem_capacity_bytes():
    """Per-chip VMEM capacity, with a conservative fallback."""
    try:
        info = pltpu.get_tpu_info()
        cap = int(getattr(info, "vmem_capacity_bytes", 0) or 0)
        if cap > 0:
            return cap
    except Exception:
        pass
    kind = _device_kind()
    if "7" in kind:                      # v7x: 64 MiB per TensorCore
        return 64 * 1024 * 1024
    if "v5" in kind or "v6" in kind:     # v5e / v6e: 128 MiB
        return 128 * 1024 * 1024
    return 64 * 1024 * 1024              # unknown: be conservative


def _choose_tf(z_dim, hid, f, vmem_cap):
    """F-tile width: multiple of 128, fits ~55% of this chip's VMEM counting
    every double-buffered operand (z, w1, b1, w2, b2, bf16 output), and —
    when possible — gives >= 2 F tiles so w2 streams/pipelines and the F axis
    can be split across v7x's two TensorCores."""
    f_ceil = _round_up(f, 128)
    budget = int(0.55 * vmem_cap)
    tb_max = 128  # conservative upper bound for the batch tile
    fixed = 2 * (tb_max * z_dim * 2 + z_dim * hid * 2 + hid * 4)
    largest_fit = None
    for tf in (4096, 2048, 1024, 512, 256, 128):
        if tf > f_ceil:
            continue
        need = fixed + 2 * (hid * tf * 2 + tf * 4 + tb_max * tf * 2)
        if need > budget:
            continue
        if largest_fit is None:
            largest_fit = tf
        if _round_up(f, tf) // tf >= 2:
            return tf
    return largest_fit if largest_fit is not None else 128


def _make_generator_kernel(tanh_in_bf16):
    def kernel(z_ref, w1_ref, b1_ref, w2_ref, b2_ref, o_ref):
        # One (F-tile j outer, B-tile i inner) grid step.
        #   z:  (TB, Z)    bf16   (tiny; re-fetched per step)
        #   w1: (Z, HID)   bf16   resident (block index never changes)
        #   b1: (1, HID)   f32    resident
        #   w2: (HID, TF)  bf16   streamed over the OUTER F axis only, so it
        #                         stays resident across the inner B loop and
        #                         is read from HBM exactly once.
        #   b2: (1, TF)    f32    streamed with w2
        #   o:  (TB, TF)   bf16
        h = jnp.dot(z_ref[...], w1_ref[...], preferred_element_type=jnp.float32)
        h = jnp.maximum(h + b1_ref[...], 0.0).astype(jnp.bfloat16)
        y = jnp.dot(h, w2_ref[...], preferred_element_type=jnp.float32)
        y = y + b2_ref[...]
        if tanh_in_bf16:
            # v6e/v7x: bf16 EUP — halves tanh vreg count and feeds bf16 store.
            o_ref[...] = jnp.tanh(y.astype(jnp.bfloat16))
        else:
            # v5e: no bf16 EUP — tanh in f32, cast only for the store.
            o_ref[...] = jnp.tanh(y).astype(jnp.bfloat16)
    return kernel


def prepare_generator_params(w1, b1, w2, b2):
    """One-time (init-time) parameter prep: bf16 weight cast, F padding to the
    chosen tile, chip-aware tile choice.  Keeps the per-call hot path free of
    weight conversions."""
    Z, HID = w1.shape
    F = w2.shape[1]
    vmem_cap = _vmem_capacity_bytes()
    TF = _choose_tf(Z, HID, F, vmem_cap)
    F_pad = _round_up(F, TF)
    kind = _device_kind()
    return dict(
        w1=jnp.asarray(w1, jnp.bfloat16),
        b1=jnp.asarray(b1, jnp.float32).reshape(1, HID),
        w2=jnp.pad(jnp.asarray(w2, jnp.float32),
                   ((0, 0), (0, F_pad - F))).astype(jnp.bfloat16),
        b2=jnp.pad(jnp.asarray(b2, jnp.float32).reshape(1, F),
                   ((0, 0), (0, F_pad - F))),
        z=Z, hid=HID, f=F, f_pad=F_pad, tf=TF,
        vmem_cap=vmem_cap,
        tanh_in_bf16=("v5" not in kind),
    )


def generator_forward(noise, params, out_chw):
    """noise: (B, Z) -> image (B, C, H, W) in bf16, NCHW like PyTorch."""
    B, Z = noise.shape
    HID, F, F_pad, TF = params["hid"], params["f"], params["f_pad"], params["tf"]
    C, HH, WW = out_chw
    assert F == C * HH * WW and Z == params["z"]

    # Batch tile: bf16 sublane minimum (16 rows), not 128.
    tb = min(_round_up(max(B, 1), 16), 128)
    B_pad = _round_up(B, tb)
    nb = B_pad // tb
    nf = F_pad // TF

    z_b = jnp.pad(noise, ((0, B_pad - B), (0, 0))).astype(jnp.bfloat16)

    # VMEM estimate already includes double buffering of every operand —
    # no extra 2x, clamped to 75% of this chip's physical capacity.
    vmem_est = 2 * (tb * Z * 2 + Z * HID * 2 + HID * 4
                    + HID * TF * 2 + TF * 4 + tb * TF * 2)
    vmem_limit = min(max(int(1.25 * vmem_est), 32 * 1024 * 1024),
                     int(0.75 * params["vmem_cap"]))

    cost = pl.CostEstimate(
        flops=2 * B_pad * Z * HID * nf + 2 * B_pad * HID * F_pad,
        transcendentals=B_pad * F_pad,
        bytes_accessed=(nf * B_pad * Z * 2            # z re-read per F tile (tiny)
                        + Z * HID * 2 + HID * 4       # resident w1 / b1
                        + HID * F_pad * 2 + F_pad * 4 # w2 / b2: single pass
                        + B_pad * F_pad * 2),         # bf16 output writeback
    )

    kernel = _make_generator_kernel(params["tanh_in_bf16"])

    flat = pl.pallas_call(
        kernel,
        out_shape=jax.ShapeDtypeStruct((B_pad, F_pad), jnp.bfloat16),
        grid_spec=pltpu.PrefetchScalarGridSpec(
            num_scalar_prefetch=0,
            grid=(nf, nb),    # F outer (streams w2 once), B inner
            in_specs=[
                pl.BlockSpec((tb, Z), lambda j, i: (i, 0)),     # z
                pl.BlockSpec((Z, HID), lambda j, i: (0, 0)),    # w1 (resident)
                pl.BlockSpec((1, HID), lambda j, i: (0, 0)),    # b1 (resident)
                pl.BlockSpec((HID, TF), lambda j, i: (0, j)),   # w2 (streamed)
                pl.BlockSpec((1, TF), lambda j, i: (0, j)),     # b2 (streamed)
            ],
            out_specs=pl.BlockSpec((tb, TF), lambda j, i: (i, j)),
        ),
        compiler_params=pltpu.CompilerParams(
            dimension_semantics=("parallel", "parallel"),
            vmem_limit_bytes=vmem_limit,
        ),
        cost_estimate=cost,
    )(z_b, params["w1"], params["b1"], params["w2"], params["b2"])

    # Glue: strip padding and reshape flat features to NCHW image.
    return flat[:B, :F].reshape(B, C, HH, WW)


if __name__ == "__main__":
    # Small, deterministic shapes consistent with a GAN generator forward:
    # latent Z=32, hidden HID=128, output image (C=4, H=16, W=16), batch B=2.
    B, Z, HID = 2, 32, 128
    C, HH, WW = 4, 16, 16
    F = C * HH * WW

    key = jax.random.PRNGKey(0)
    k_z, k_w1, k_b1, k_w2, k_b2 = jax.random.split(key, 5)

    noise = jax.random.normal(k_z, (B, Z), dtype=jnp.float32)
    w1 = jax.random.normal(k_w1, (Z, HID), dtype=jnp.float32) * 0.05
    b1 = jax.random.normal(k_b1, (1, HID), dtype=jnp.float32) * 0.01
    w2 = jax.random.normal(k_w2, (HID, F), dtype=jnp.float32) * 0.05
    b2 = jax.random.normal(k_b2, (1, F), dtype=jnp.float32) * 0.01

    params = prepare_generator_params(w1, b1, w2, b2)   # one-time init cost
    out = generator_forward(noise, params, (C, HH, WW))
    out = jax.block_until_ready(out)
    assert out.shape == (B, C, HH, WW)
    assert out.dtype == jnp.bfloat16

    out_f32 = out.astype(jnp.float32)

    # Reference with the same bf16-operand / f32-accumulate matmul recipe.
    zb, w1b, w2b = (noise.astype(jnp.bfloat16), w1.astype(jnp.bfloat16),
                    w2.astype(jnp.bfloat16))
    h_ref = jnp.maximum(
        jnp.dot(zb, w1b, preferred_element_type=jnp.float32) + b1, 0.0)
    y_ref = jnp.dot(h_ref.astype(jnp.bfloat16), w2b,
                    preferred_element_type=jnp.float32) + b2
    ref_bf16 = jnp.tanh(y_ref).reshape(B, C, HH, WW)
    assert jnp.allclose(out_f32, ref_bf16, atol=2e-2, rtol=2e-2)

    # Loose sanity check against the pure-f32 math.
    ref_f32 = jnp.tanh(jnp.maximum(noise @ w1 + b1, 0.0) @ w2 + b2)
    assert jnp.allclose(out_f32, ref_f32.reshape(B, C, HH, WW),
                        atol=5e-2, rtol=5e-2)

    print("KERNEL_OK")
</pallas_src>

<mosaic_0001>
module attributes {stable_mosaic.version = 11 : i64} {
  func.func @kernel(%arg0: i32, %arg1: i32, %arg2: memref<16x32xbf16, #tpu.memory_space<vmem>>, %arg3: memref<32x128xbf16, #tpu.memory_space<vmem>>, %arg4: memref<1x128xf32, #tpu.memory_space<vmem>>, %arg5: memref<128x512xbf16, #tpu.memory_space<vmem>>, %arg6: memref<1x512xf32, #tpu.memory_space<vmem>>, %arg7: memref<16x512xbf16, #tpu.memory_space<vmem>>) attributes {dimension_semantics = [#tpu.dimension_semantics<parallel>, #tpu.dimension_semantics<parallel>], iteration_bounds = array<i64: 2, 1>, scalar_prefetch = 0 : i64, scratch_operands = 0 : i64, tpu.core_type = #tpu.core_type<tc>, window_params = [{transform_indices = @transform_0, window_bounds = array<i64: 16, 32>}, {pipeline_mode = #tpu.pipeline_mode<synchronous>, transform_indices = @transform_1, window_bounds = array<i64: 32, 128>}, {pipeline_mode = #tpu.pipeline_mode<synchronous>, transform_indices = @transform_2, window_bounds = array<i64: 1, 128>}, {transform_indices = @transform_3, window_bounds = array<i64: 128, 512>}, {transform_indices = @transform_4, window_bounds = array<i64: 1, 512>}, {transform_indices = @transform_5, window_bounds = array<i64: 16, 512>}]} {
    %c0 = arith.constant 0 : index
    %c0_0 = arith.constant 0 : index
    %0 = vector.load %arg2[%c0, %c0_0] : memref<16x32xbf16, #tpu.memory_space<vmem>>, vector<16x32xbf16>
    %c0_1 = arith.constant 0 : index
    %c0_2 = arith.constant 0 : index
    %1 = vector.load %arg3[%c0_1, %c0_2] : memref<32x128xbf16, #tpu.memory_space<vmem>>, vector<32x128xbf16>
    %cst = arith.constant dense<0.000000e+00> : vector<16x128xf32>
    %2 = tpu.matmul %0, %1, %cst {dimension_numbers = #tpu.dot_dimension_numbers<[1], [0], [0], [1], [0, 0, 1, 1], [], []>} : vector<16x32xbf16>, vector<32x128xbf16>, vector<16x128xf32> -> vector<16x128xf32>
    %c0_3 = arith.constant 0 : index
    %c0_4 = arith.constant 0 : index
    %3 = vector.load %arg4[%c0_3, %c0_4] : memref<1x128xf32, #tpu.memory_space<vmem>>, vector<1x128xf32>
    %4 = vector.broadcast %3 : vector<1x128xf32> to vector<16x128xf32>
    %5 = arith.addf %2, %4 : vector<16x128xf32>
    %cst_5 = arith.constant 0.000000e+00 : f32
    %6 = vector.broadcast %cst_5 : f32 to vector<16x128xf32>
    %7 = arith.maximumf %5, %6 : vector<16x128xf32>
    %8 = arith.truncf %7 : vector<16x128xf32> to vector<16x128xbf16>
    %c0_6 = arith.constant 0 : index
    %c0_7 = arith.constant 0 : index
    %9 = vector.load %arg5[%c0_6, %c0_7] : memref<128x512xbf16, #tpu.memory_space<vmem>>, vector<128x512xbf16>
    %cst_8 = arith.constant dense<0.000000e+00> : vector<16x512xf32>
    %10 = tpu.matmul %8, %9, %cst_8 {dimension_numbers = #tpu.dot_dimension_numbers<[1], [0], [0], [1], [0, 0, 1, 1], [], []>} : vector<16x128xbf16>, vector<128x512xbf16>, vector<16x512xf32> -> vector<16x512xf32>
    %c0_9 = arith.constant 0 : index
    %c0_10 = arith.constant 0 : index
    %11 = vector.load %arg6[%c0_9, %c0_10] : memref<1x512xf32, #tpu.memory_space<vmem>>, vector<1x512xf32>
    %12 = vector.broadcast %11 : vector<1x512xf32> to vector<16x512xf32>
    %13 = arith.addf %10, %12 : vector<16x512xf32>
    %14 = arith.truncf %13 : vector<16x512xf32> to vector<16x512xbf16>
    %15 = math.tanh %14 : vector<16x512xbf16>
    %c0_11 = arith.constant 0 : index
    %c0_12 = arith.constant 0 : index
    %16 = vector.load %arg7[%c0_11, %c0_12] : memref<16x512xbf16, #tpu.memory_space<vmem>>, vector<16x512xbf16>
    tpu.vector_store %arg7[%c0_11, %c0_12], %15 {strides = array<i32>} : memref<16x512xbf16, #tpu.memory_space<vmem>>, vector<16x512xbf16>,
    return
  }
  func.func @transform_0(%arg0: i32, %arg1: i32) -> (i32, i32) {
    %c0_i32 = arith.constant 0 : i32
    %c0_i32_0 = arith.constant 0 : i32
    return %arg1, %c0_i32 : i32, i32
  }
  func.func @transform_1(%arg0: i32, %arg1: i32) -> (i32, i32) {
    %c0_i32 = arith.constant 0 : i32
    %c0_i32_0 = arith.constant 0 : i32
    %c0_i32_1 = arith.constant 0 : i32
    return %c0_i32, %c0_i32_0 : i32, i32
  }
  func.func @transform_2(%arg0: i32, %arg1: i32) -> (i32, i32) {
    %c0_i32 = arith.constant 0 : i32
    %c0_i32_0 = arith.constant 0 : i32
    %c0_i32_1 = arith.constant 0 : i32
    return %c0_i32, %c0_i32_0 : i32, i32
  }
  func.func @transform_3(%arg0: i32, %arg1: i32) -> (i32, i32) {
    %c0_i32 = arith.constant 0 : i32
    %c0_i32_0 = arith.constant 0 : i32
    return %c0_i32, %arg0 : i32, i32
  }
  func.func @transform_4(%arg0: i32, %arg1: i32) -> (i32, i32) {
    %c0_i32 = arith.constant 0 : i32
    %c0_i32_0 = arith.constant 0 : i32
    return %c0_i32, %arg0 : i32, i32
  }
  func.func @transform_5(%arg0: i32, %arg1: i32) -> (i32, i32) {
    %c0_i32 = arith.constant 0 : i32
    return %arg1, %arg0 : i32, i32
  }
}

</mosaic_0001>

<llo_original>
// kernel: tpu_custom_call.1
$region0: #{tpu_custom_call.1}
  #allocation0 [shape = 'u32[]', space=smem, size = 0x4, offset = 0x4, fixed_abs, tag = 'smem constant byte address 0x4 - core index']
  #allocation1 [shape = 'u32[144,128]{1,0:T(1,128)}', space=vmem, size = 0x12000, scoped, tag = 'internal scratch']
  %s0 = inlined_call_operand.hbm [shape: bf16[16,32], index: 0, kind: input, shape index: {}]
  %s1 = inlined_call_operand.hbm [shape: bf16[32,128], index: 1, kind: input, shape index: {}]
  %s2 = inlined_call_operand.vmem [shape: f32[1,128], index: 2, kind: input, shape index: {}]
  %s3 = inlined_call_operand.hbm [shape: bf16[128,1024], index: 3, kind: input, shape index: {}]
  %s4 = inlined_call_operand.hbm [shape: f32[1,1024], index: 4, kind: input, shape index: {}]
  %s5 = inlined_call_operand.hbm [shape: bf16[16,1024], index: 5, kind: output, shape index: {}]
  %s6 = sld [smem:[#allocation0]]
  $region69: #{tpu_custom_call.1} parent=0
    _
  %s8 = ssub.s32 1, %s6
  %s9 = scalar_select 0, %s8, %s6
  $region1: #{tpu_custom_call.1} parent=0
    #allocation2 [shape = 'u8[4096]{0}', space=vmem, size = 0x1000, scoped, tag = 'input window, operand 0, single buffered']
    #allocation3 [shape = 's32[2]{0}', space=sflag, size = 0x8, scoped, tag = 'scoped memory for tpu_custom_call.1']
    #allocation4 [shape = 's32[2]{0}', space=sflag, size = 0x8, scoped, tag = 'scoped memory for tpu_custom_call.1']
    #allocation5 [shape = 'u8[8192]{0}', space=vmem, size = 0x2000, scoped, tag = 'input window, operand 1, single buffered']
    #allocation6 [shape = 's32[1]{0}', space=sflag, size = 0x4, scoped, tag = 'scoped memory for tpu_custom_call.1']
    #allocation7 [shape = 'u8[262144]{0}', space=vmem, size = 0x40000, scoped, tag = 'input window, operand 3']
    #allocation8 [shape = 'u8[4096]{0}', space=vmem, size = 0x1000, scoped, tag = 'input window, operand 4']
    #allocation9 [shape = 'u8[32768]{0}', space=vmem, size = 0x8000, scoped, tag = 'output window, operand 0']
    %10 = vsyncpa [#allocation3], 0
    %11 = vsyncpa [#allocation6], 0
    %12 = vsyncpa [#allocation4], 0
    %s13 = scalar_lea.sflag [#allocation4], 1
    %14 = vsyncpa %s13, 0
    loop: start=0, step=1, limit=4
    $region2: #{tpu_custom_call.1} parent=1 // loop_pre_header
      _
    $region3: #{tpu_custom_call.1} parent=1 // loop_header
      %s16 = sphi 0, %s20
      %p17 = scmp.ge.s32.totalorder %s16, 4
      %s23 = sphi 0, %s35
      %s24 = sphi 0, %s31
      %s25 = sphi 0, %s23
      %s26 = sphi 0, %s24
      %s27 = sphi 0, %s25
      %s28 = sphi 0, %s26
      %s38 = sphi 0, %s40
      %s41 = sphi 0, %s38
      %s42 = sphi 0, %s41
      %s58 = sphi 0, %s42
      %s62 = sphi 0, %s62
      %s64 = sphi 0, %s62
      %s65 = sphi 0, %s64
      %s79 = sphi 0, %s65
      %s83 = sphi 0, %s83
      %s85 = sphi 0, %s83
      %s86 = sphi 0, %s85
      %s100 = sphi 0, %s86
      %s106 = sphi 0, %s108
      %s109 = sphi 0, %s106
      %s110 = sphi 0, %s109
      %s126 = sphi 0, %s110
      %s132 = sphi 0, %s134
      %s135 = sphi 0, %s132
      %s136 = sphi 0, %s135
      %s152 = sphi 0, %s136
      %s160 = sphi 0, %s162
      %s163 = sphi 0, %s160
      %s164 = sphi 0, %s163
      %s180 = sphi 0, %s164
    $region4: #{tpu_custom_call.1} parent=1 // loop_header_branch
      %19 = sbr.rel (%p17) target = $region8
    $region5: #{tpu_custom_call.1} parent=1 // loop_body
      %s21 = ssub.s32 %s16, 1
      %s22 = ssub.s32 %s16, 2
      %s29 = sadd.s32 1, %s24
      %p30 = scmp.ge.s32.totalorder %s29, 1
      %s31 = scalar_select %p30, 0, %s29
      %s32 = sadd.s32 1, %s23
      %s33 = scalar_select %p30, %s32, %s23
      %p34 = scmp.ge.s32.totalorder %s33, 2
      %s35 = scalar_select %p34, 0, %s33
      %s36 = ssub.s32 %s24, %s31
      %p37 = scmp.eq.s32.totalorder %s36, 0
      %s39 = sadd.s32 %s38, 1
      %s40 = scalar_select %p37, %s38, %s39
      %p43 = pneg %p37
      %p44 = scmp.eq.s32.totalorder %s16, 1
      %p45 = por %p43, %p44
      %p46 = scmp.ne.s32.totalorder %s38, %s41
      %p47 = scmp.eq.s32.totalorder %s16, 0
      %p48 = por %p46, %p47
      %p49 = scmp.ne.s32.totalorder %s38, %s41
      %p50 = scmp.eq.s32.totalorder %s21, 1
      %p51 = por %p49, %p50
      %p52 = scmp.ne.s32.totalorder %s41, %s42
      %p53 = scmp.eq.s32.totalorder %s21, 0
      %p54 = por %p52, %p53
      %p55 = scmp.ne.s32.totalorder %s41, %s42
      %p56 = scmp.eq.s32.totalorder %s22, 1
      %p57 = por %p55, %p56
      %p59 = scmp.ne.s32.totalorder %s42, %s58
      %p60 = scmp.eq.s32.totalorder %s22, 0
      %p61 = por %p59, %p60
      %s63 = sadd.s32 %s62, 1
      %p66 = scmp.eq.s32.totalorder %s16, 1
      %p67 = scmp.ne.s32.totalorder %s62, %s64
      %p68 = scmp.eq.s32.totalorder %s16, 0
      %p69 = por %p67, %p68
      %p70 = scmp.ne.s32.totalorder %s62, %s64
      %p71 = scmp.eq.s32.totalorder %s21, 1
      %p72 = por %p70, %p71
      %p73 = scmp.ne.s32.totalorder %s64, %s65
      %p74 = scmp.eq.s32.totalorder %s21, 0
      %p75 = por %p73, %p74
      %p76 = scmp.ne.s32.totalorder %s64, %s65
      %p77 = scmp.eq.s32.totalorder %s22, 1
      %p78 = por %p76, %p77
      %p80 = scmp.ne.s32.totalorder %s65, %s79
      %p81 = scmp.eq.s32.totalorder %s22, 0
      %p82 = por %p80, %p81
      %s84 = sadd.s32 %s83, 1
      %p87 = scmp.eq.s32.totalorder %s16, 1
      %p88 = scmp.ne.s32.totalorder %s83, %s85
      %p89 = scmp.eq.s32.totalorder %s16, 0
      %p90 = por %p88, %p89
      %p91 = scmp.ne.s32.totalorder %s83, %s85
      %p92 = scmp.eq.s32.totalorder %s21, 1
      %p93 = por %p91, %p92
      %p94 = scmp.ne.s32.totalorder %s85, %s86
      %p95 = scmp.eq.s32.totalorder %s21, 0
      %p96 = por %p94, %p95
      %p97 = scmp.ne.s32.totalorder %s85, %s86
      %p98 = scmp.eq.s32.totalorder %s22, 1
      %p99 = por %p97, %p98
      %p101 = scmp.ne.s32.totalorder %s86, %s100
      %p102 = scmp.eq.s32.totalorder %s22, 0
      %p103 = por %p101, %p102
      %s104 = ssub.s32 %s23, %s35
      %p105 = scmp.eq.s32.totalorder %s104, 0
      %s107 = sadd.s32 %s106, 1
      %s108 = scalar_select %p105, %s106, %s107
      %p111 = pneg %p105
      %p112 = scmp.eq.s32.totalorder %s16, 1
      %p113 = por %p111, %p112
      %p114 = scmp.ne.s32.totalorder %s106, %s109
      %p115 = scmp.eq.s32.totalorder %s16, 0
      %p116 = por %p114, %p115
      %p117 = scmp.ne.s32.totalorder %s106, %s109
      %p118 = scmp.eq.s32.totalorder %s21, 1
      %p119 = por %p117, %p118
      %p120 = scmp.ne.s32.totalorder %s109, %s110
      %p121 = scmp.eq.s32.totalorder %s21, 0
      %p122 = por %p120, %p121
      %p123 = scmp.ne.s32.totalorder %s109, %s110
      %p124 = scmp.eq.s32.totalorder %s22, 1
      %p125 = por %p123, %p124
      %p127 = scmp.ne.s32.totalorder %s110, %s126
      %p128 = scmp.eq.s32.totalorder %s22, 0
      %p129 = por %p127, %p128
      %s130 = ssub.s32 %s23, %s35
      %p131 = scmp.eq.s32.totalorder %s130, 0
      %s133 = sadd.s32 %s132, 1
      %s134 = scalar_select %p131, %s132, %s133
      %p137 = pneg %p131
      %p138 = scmp.eq.s32.totalorder %s16, 1
      %p139 = por %p137, %p138
      %p140 = scmp.ne.s32.totalorder %s132, %s135
      %p141 = scmp.eq.s32.totalorder %s16, 0
      %p142 = por %p140, %p141
      %p143 = scmp.ne.s32.totalorder %s132, %s135
      %p144 = scmp.eq.s32.totalorder %s21, 1
      %p145 = por %p143, %p144
      %p146 = scmp.ne.s32.totalorder %s135, %s136
      %p147 = scmp.eq.s32.totalorder %s21, 0
      %p148 = por %p146, %p147
      %p149 = scmp.ne.s32.totalorder %s135, %s136
      %p150 = scmp.eq.s32.totalorder %s22, 1
      %p151 = por %p149, %p150
      %p153 = scmp.ne.s32.totalorder %s136, %s152
      %p154 = scmp.eq.s32.totalorder %s22, 0
      %p155 = por %p153, %p154
      %s156 = ssub.s32 %s24, %s31
      %s157 = ssub.s32 %s23, %s35
      %s158 = sor.u32 %s156, %s157
      %p159 = scmp.eq.s32.totalorder %s158, 0
      %s161 = sadd.s32 %s160, 1
      %s162 = scalar_select %p159, %s160, %s161
      %p165 = pneg %p159
      %p166 = scmp.eq.s32.totalorder %s16, 1
      %p167 = por %p165, %p166
      %p168 = scmp.ne.s32.totalorder %s160, %s163
      %p169 = scmp.eq.s32.totalorder %s16, 0
      %p170 = por %p168, %p169
      %p171 = scmp.ne.s32.totalorder %s160, %s163
      %p172 = scmp.eq.s32.totalorder %s21, 1
      %p173 = por %p171, %p172
      %p174 = scmp.ne.s32.totalorder %s163, %s164
      %p175 = scmp.eq.s32.totalorder %s21, 0
      %p176 = por %p174, %p175
      %p177 = scmp.ne.s32.totalorder %s163, %s164
      %p178 = scmp.eq.s32.totalorder %s22, 1
      %p179 = por %p177, %p178
      %p181 = scmp.ne.s32.totalorder %s164, %s180
      %p182 = scmp.eq.s32.totalorder %s22, 0
      %p183 = por %p181, %p182
      %p184 = scmp.le.s32.totalorder 1, %s16
      %p185 = scmp.lt.s32.totalorder %s16, 3
      %p186 = pnand %p184, %p185
      %p187 = pneg %p186
      // Predicated region
      $region9: #{tpu_custom_call.1} parent=5 // pred_check
        _
      $region10: #{tpu_custom_call.1} parent=5 // pred_check_branch
        %189 = sbr.rel (%p186) target = $region12
      $region11: #{tpu_custom_call.1} parent=5 // pred_region
        %s190 = ssub.s32 %s16, 1
        // Predicated region
        $region13: #{tpu_custom_call.1} parent=11 // pred_check
          %p191 = pneg %p54
        $region14: #{tpu_custom_call.1} parent=11 // pred_check_branch
          %193 = sbr.rel (%p191) target = $region16
        $region15: #{tpu_custom_call.1} parent=11 // pred_region
          %s194 = smul.u32 2, %s26
          %s196 = ssub.s32 128, 128
          %197 = vsyncadd [#allocation3], %s196
          %s198 = smul.addr %s194, 64
          %s199 = scalar_lea.hbm %s0, %s198
          %s200 = sshll.u32 [#allocation2], 4
          %s201 = int_to_ptr.vmem [resolvable:$true] %s200
          %206 = dma.hbm_to_vmem [thread:$0]  %s199, 128, %s201, [#allocation3], 64, 64, 4
        $region16: #{tpu_custom_call.1} parent=11 // pred_fallthru
          _
        // Predicated region
        $region17: #{tpu_custom_call.1} parent=11 // pred_check
          %p207 = pneg %p75
        $region18: #{tpu_custom_call.1} parent=11 // pred_check_branch
          %209 = sbr.rel (%p207) target = $region20
        $region19: #{tpu_custom_call.1} parent=11 // pred_region
          %s211 = ssub.s32 256, 256
          %212 = vsyncadd [#allocation6], %s211
          %s213 = sshll.u32 [#allocation5], 4
          %s214 = int_to_ptr.vmem [resolvable:$true] %s213
          %219 = dma.hbm_to_vmem [thread:$0]  %s1, 256, %s214, [#allocation6], 64, 64, 4
        $region20: #{tpu_custom_call.1} parent=11 // pred_fallthru
          _
        // Predicated region
        $region21: #{tpu_custom_call.1} parent=11 // pred_check
          %p220 = pneg %p96
        $region22: #{tpu_custom_call.1} parent=11 // pred_check_branch
          %222 = sbr.rel (%p220) target = $region24
        $region23: #{tpu_custom_call.1} parent=11 // pred_region
          _
        $region24: #{tpu_custom_call.1} parent=11 // pred_fallthru
          _
      $region12: #{tpu_custom_call.1} parent=5 // pred_fallthru
        _
      %p223 = scmp.lt.s32.totalorder %s16, 2
      // Predicated region
      $region25: #{tpu_custom_call.1} parent=5 // pred_check
        %p224 = pneg %p223
      $region26: #{tpu_custom_call.1} parent=5 // pred_check_branch
        %226 = sbr.rel (%p224) target = $region28
      $region27: #{tpu_custom_call.1} parent=5 // pred_region
        // Predicated region
        $region29: #{tpu_custom_call.1} parent=27 // pred_check
          %p227 = pneg %p116
        $region30: #{tpu_custom_call.1} parent=27 // pred_check_branch
          %229 = sbr.rel (%p227) target = $region32
        $region31: #{tpu_custom_call.1} parent=27 // pred_region
          %s230 = sand.u32 %s16, 1
          %s231 = scalar_lea.sflag [#allocation3], %s230
          %s232 = sand.u32 %s106, 1
          %s233 = smul.addr %s232, 256
          %s234 = scalar_lea.vmem [#allocation7], %s233
          %s235 = smul.u32 4, %s23
          %s237 = ssub.s32 4096, 4096
          %238 = vsyncadd %s231, %s237
          %s239 = smul.addr %s235, 64
          %s240 = scalar_lea.hbm %s3, %s239
          %s241 = sshll.u32 %s234, 4
          %s242 = int_to_ptr.vmem [resolvable:$true] %s241
          %247 = dma.hbm_to_vmem [thread:$0]  %s240, 4096, %s242, %s231, 512, 256, 16
        $region32: #{tpu_custom_call.1} parent=27 // pred_fallthru
          _
        // Predicated region
        $region33: #{tpu_custom_call.1} parent=27 // pred_check
          %p248 = pneg %p142
        $region34: #{tpu_custom_call.1} parent=27 // pred_check_branch
          %250 = sbr.rel (%p248) target = $region36
        $region35: #{tpu_custom_call.1} parent=27 // pred_region
          %s251 = sand.u32 %s16, 1
          %s252 = scalar_lea.sflag [#allocation3], %s251
          %s253 = sand.u32 %s132, 1
          %s254 = smul.addr %s253, 4
          %s255 = scalar_lea.vmem [#allocation8], %s254
          %s256 = smul.u32 4, %s23
          %s258 = ssub.s32 64, 64
          %259 = vsyncadd %s252, %s258
          %s260 = smul.addr %s256, 16
          %s261 = scalar_lea.hbm %s4, %s260
          %s263 = sshll.u32 %s255, 4
          %s264 = int_to_ptr.vmem [resolvable:$true] %s263
          %266 = dma.hbm_to_vmem [thread:$0]  %s261, 64, %s264, %s252
        $region36: #{tpu_custom_call.1} parent=27 // pred_fallthru
          _
      $region28: #{tpu_custom_call.1} parent=5 // pred_fallthru
        _
      %p267 = scmp.le.s32.totalorder 1, %s16
      %p268 = scmp.lt.s32.totalorder %s16, 3
      %p269 = pnand %p267, %p268
      %p270 = pneg %p269
      // Predicated region
      $region37: #{tpu_custom_call.1} parent=5 // pred_check
        _
      $region38: #{tpu_custom_call.1} parent=5 // pred_check_branch
        %272 = sbr.rel (%p269) target = $region40
      $region39: #{tpu_custom_call.1} parent=5 // pred_region
        %s273 = ssub.s32 %s16, 1
        // Predicated region
        $region41: #{tpu_custom_call.1} parent=39 // pred_check
          %p274 = pneg %p54
        $region42: #{tpu_custom_call.1} parent=39 // pred_check_branch
          %276 = sbr.rel (%p274) target = $region44
        $region43: #{tpu_custom_call.1} parent=39 // pred_region
          %277 = dma.done [#allocation3], 128
        $region44: #{tpu_custom_call.1} parent=39 // pred_fallthru
          _
        // Predicated region
        $region45: #{tpu_custom_call.1} parent=39 // pred_check
          %p278 = pneg %p75
        $region46: #{tpu_custom_call.1} parent=39 // pred_check_branch
          %280 = sbr.rel (%p278) target = $region48
        $region47: #{tpu_custom_call.1} parent=39 // pred_region
          %281 = dma.done [#allocation6], 256
        $region48: #{tpu_custom_call.1} parent=39 // pred_fallthru
          _
        %s282 = sand.u32 %s21, 1
        %s283 = scalar_lea.sflag [#allocation3], %s282
        %s284 = sand.u32 %s109, 1
        %s285 = smul.addr %s284, 256
        %s286 = scalar_lea.vmem [#allocation7], %s285
        // Predicated region
        $region49: #{tpu_custom_call.1} parent=39 // pred_check
          %p287 = pneg %p122
        $region50: #{tpu_custom_call.1} parent=39 // pred_check_branch
          %289 = sbr.rel (%p287) target = $region52
        $region51: #{tpu_custom_call.1} parent=39 // pred_region
          %290 = dma.done %s283, 4096
        $region52: #{tpu_custom_call.1} parent=39 // pred_fallthru
          _
        %s291 = sand.u32 %s21, 1
        %s292 = scalar_lea.sflag [#allocation3], %s291
        %s293 = sand.u32 %s135, 1
        %s294 = smul.addr %s293, 4
        %s295 = scalar_lea.vmem [#allocation8], %s294
        // Predicated region
        $region53: #{tpu_custom_call.1} parent=39 // pred_check
          %p296 = pneg %p148
        $region54: #{tpu_custom_call.1} parent=39 // pred_check_branch
          %298 = sbr.rel (%p296) target = $region56
        $region55: #{tpu_custom_call.1} parent=39 // pred_region
          %299 = dma.done %s292, 64
        $region56: #{tpu_custom_call.1} parent=39 // pred_fallthru
          _
        %p300 = pneg %p54
        %p301 = pneg %p51
        %p302 = pneg %p75
        %p303 = pneg %p72
        %p304 = pneg %p96
        %p305 = pneg %p93
        %s306 = sand.u32 %s21, 1
        %s307 = scalar_lea.sflag [#allocation3], %s306
        %s308 = sand.u32 %s109, 1
        %s309 = smul.addr %s308, 256
        %s310 = scalar_lea.vmem [#allocation7], %s309
        %p311 = pneg %p122
        %p312 = pneg %p119
        %s313 = sand.u32 %s21, 1
        %s314 = scalar_lea.sflag [#allocation3], %s313
        %s315 = sand.u32 %s135, 1
        %s316 = smul.addr %s315, 4
        %s317 = scalar_lea.vmem [#allocation8], %s316
        %p318 = pneg %p148
        %p319 = pneg %p145
        %p320 = pneg %p176
        %p321 = pneg %p173
        %s322 = sand.u32 %s163, 1
        %s323 = scalar_lea.sflag [#allocation4], %s322
        %s324 = sand.u32 %s163, 1
        %s325 = smul.addr %s324, 32
        %s326 = scalar_lea.vmem [#allocation9], %s325
        %s327 = smul.u32 2, %s26
        %s328 = smul.u32 4, %s25
        %s329 = smul.u32 4, %s25
        %s330 = smul.u32 2, %s26
        %s331 = smul.u32 4, %s25
        %v333 = vld [vmem:[#allocation2] sm:$0xf]
        %v334 = vld [vmem:[#allocation2 + $0x4] sm:$0xf]
        %v335 = vld [vmem:[#allocation5] sm:$0xf]
        %v336 = vld [vmem:[#allocation5 + $0x4] sm:$0xf]
        %v337 = vld [vmem:[#allocation5 + $0x8] sm:$0xf]
        %v338 = vld [vmem:[#allocation5 + $0xc] sm:$0xf]
        %v339 = vld [vmem:[%s2] sm:$0x1]
        %v341 = vlaneseq
        %v342 = vshrl.u32 %v341, 7
        %v343 = vsub.s32 0, %v342
        %v344 = vrot.slane %v339, %v343
        %v348 = vunpack.c.l.b16 %v333
        %v349 = vunpack.c.l.b16 %v334
        %v350 = vpack.c.b16 %v349, %v348
        %v355 = vunpack.c.l.b16 %v335
        %v356 = vunpack.c.l.b16 %v336
        %v357 = vunpack.c.l.b16 %v337
        %v358 = vunpack.c.l.b16 %v338
        %v359 = vpack.c.b16 %v356, %v355
        %v360 = vpack.c.b16 %v358, %v357
        %vm363 = vcmask 261120
        %v365 = vsel %vm363, %v350, 0
        %367 = vmatprep.subr.bf16.mxu0 0
        %368 = vmatpush1.bf16.msra.mxu0 0
        %369 = vmatprep.subr.bf16.mxu0 0
        %370 = vmatpush1.bf16.msra.mxu0 0
        %371 = vmatprep.subr.bf16.mxu0 0
        %372 = vmatpush1.bf16.msra.mxu0 0
        %373 = vmatprep.subr.bf16.mxu0 0
        %374 = vmatpush1.bf16.msra.mxu0 0
        %375 = vmatprep.subr.bf16.mxu0 0
        %376 = vmatpush1.bf16.msra.mxu0 0
        %377 = vmatprep.subr.bf16.mxu0 0
        %378 = vmatpush1.bf16.msra.mxu0 0
        %379 = vmatprep.subr.bf16.mxu0 0
        %380 = vmatpush1.bf16.msra.mxu0 %v360
        %381 = vmatprep.subr.bf16.mxu0 0
        %382 = vmatpush1.bf16.msra.mxu0 %v359
        %383 = vmatprep.subr.bf16.mxu0 0
        %384 = vmatpush2.bf16.msra.mxu0 0
        %385 = vmatprep.subr.bf16.mxu0 0
        %386 = vmatpush2.bf16.msra.mxu0 0
        %387 = vmatprep.subr.bf16.mxu0 0
        %388 = vmatpush2.bf16.msra.mxu0 0
        %389 = vmatprep.subr.bf16.mxu0 0
        %390 = vmatpush2.bf16.msra.mxu0 0
        %391 = vmatprep.subr.bf16.mxu0 0
        %392 = vmatpush2.bf16.msra.mxu0 0
        %393 = vmatprep.subr.bf16.mxu0 0
        %394 = vmatpush2.bf16.msra.mxu0 0
        %395 = vmatprep.subr.bf16.mxu0 0
        %396 = vmatpush2.bf16.msra.mxu0 0
        %397 = vmatprep.subr.bf16.mxu0 0
        %398 = vmatpush2.bf16.msra.mxu0 0
        %399 = vmatprep.mubr.bf16.mxu0 0
        %400 = vmatmul.mubr.bf16.gmra.mxu0 %v365
        %v401 = vpop.f32.mrf.mxu0
        %v402 = vadd.f32 %v344, %v401
        %v403 = vpop.f32.mrf.mxu0
        %v404 = vpop.f32.mrf.mxu0
        %v405 = vadd.f32 %v344, %v404
        %v406 = vpop.f32.mrf.mxu0
        %407 = vdwg.mxu0
        %v408 = vmax.f32 %v402, 0.0
        %v409 = vmax.f32 %v405, 0.0
        %v410 = vpack.c.bf16 %v409, %v408
        %v411 = vld [vmem:[%s286] sm:$0xff]
        %v412 = vld [vmem:[%s286 + $0x8] sm:$0xff]
        %v413 = vld [vmem:[%s286 + $0x10] sm:$0xff]
        %v414 = vld [vmem:[%s286 + $0x18] sm:$0xff]
        %v415 = vld [vmem:[%s286 + $0x20] sm:$0xff]
        %v416 = vld [vmem:[%s286 + $0x28] sm:$0xff]
        %v417 = vld [vmem:[%s286 + $0x30] sm:$0xff]
        %v418 = vld [vmem:[%s286 + $0x38] sm:$0xff]
        %v419 = vld [vmem:[%s286 + $0x40] sm:$0xff]
        %v420 = vld [vmem:[%s286 + $0x48] sm:$0xff]
        %v421 = vld [vmem:[%s286 + $0x50] sm:$0xff]
        %v422 = vld [vmem:[%s286 + $0x58] sm:$0xff]
        %v423 = vld [vmem:[%s286 + $0x60] sm:$0xff]
        %v424 = vld [vmem:[%s286 + $0x68] sm:$0xff]
        %v425 = vld [vmem:[%s286 + $0x70] sm:$0xff]
        %v426 = vld [vmem:[%s286 + $0x78] sm:$0xff]
        %v427 = vld [vmem:[%s286 + $0x80] sm:$0xff]
        %v428 = vld [vmem:[%s286 + $0x88] sm:$0xff]
        %v429 = vld [vmem:[%s286 + $0x90] sm:$0xff]
        %v430 = vld [vmem:[%s286 + $0x98] sm:$0xff]
        %v431 = vld [vmem:[%s286 + $0xa0] sm:$0xff]
        %v432 = vld [vmem:[%s286 + $0xa8] sm:$0xff]
        %v433 = vld [vmem:[%s286 + $0xb0] sm:$0xff]
        %v434 = vld [vmem:[%s286 + $0xb8] sm:$0xff]
        %v435 = vld [vmem:[%s286 + $0xc0] sm:$0xff]
        %v436 = vld [vmem:[%s286 + $0xc8] sm:$0xff]
        %v437 = vld [vmem:[%s286 + $0xd0] sm:$0xff]
        %v438 = vld [vmem:[%s286 + $0xd8] sm:$0xff]
        %v439 = vld [vmem:[%s286 + $0xe0] sm:$0xff]
        %v440 = vld [vmem:[%s286 + $0xe8] sm:$0xff]
        %v441 = vld [vmem:[%s286 + $0xf0] sm:$0xff]
        %v442 = vld [vmem:[%s286 + $0xf8] sm:$0xff]
        %v443 = vld [vmem:[%s295] sm:$0xf]
        %v445 = vlaneseq
        %v446 = vshrl.u32 %v445, 7
        %v447 = vsub.s32 0, %v446
        %v448 = vrot.slane %v443, %v447
        %v449 = vlaneseq
        %v450 = vshrl.u32 %v449, 7
        %v451 = vsub.s32 1, %v450
        %v452 = vrot.slane %v443, %v451
        %v453 = vlaneseq
        %v454 = vshrl.u32 %v453, 7
        %v455 = vsub.s32 2, %v454
        %v456 = vrot.slane %v443, %v455
        %v457 = vlaneseq
        %v458 = vshrl.u32 %v457, 7
        %v459 = vsub.s32 3, %v458
        %v460 = vrot.slane %v443, %v459
        %v497 = vunpack.c.l.b16 %v411
        %v498 = vunpack.c.h.b16 %v411
        %v499 = vunpack.c.l.b16 %v412
        %v500 = vunpack.c.h.b16 %v412
        %v501 = vunpack.c.l.b16 %v413
        %v502 = vunpack.c.h.b16 %v413
        %v503 = vunpack.c.l.b16 %v414
        %v504 = vunpack.c.h.b16 %v414
        %v505 = vunpack.c.l.b16 %v415
        %v506 = vunpack.c.h.b16 %v415
        %v507 = vunpack.c.l.b16 %v416
        %v508 = vunpack.c.h.b16 %v416
        %v509 = vunpack.c.l.b16 %v417
        %v510 = vunpack.c.h.b16 %v417
        %v511 = vunpack.c.l.b16 %v418
        %v512 = vunpack.c.h.b16 %v418
        %v513 = vunpack.c.l.b16 %v419
        %v514 = vunpack.c.h.b16 %v419
        %v515 = vunpack.c.l.b16 %v420
        %v516 = vunpack.c.h.b16 %v420
        %v517 = vunpack.c.l.b16 %v421
        %v518 = vunpack.c.h.b16 %v421
        %v519 = vunpack.c.l.b16 %v422
        %v520 = vunpack.c.h.b16 %v422
        %v521 = vunpack.c.l.b16 %v423
        %v522 = vunpack.c.h.b16 %v423
        %v523 = vunpack.c.l.b16 %v424
        %v524 = vunpack.c.h.b16 %v424
        %v525 = vunpack.c.l.b16 %v425
        %v526 = vunpack.c.h.b16 %v425
        %v527 = vunpack.c.l.b16 %v426
        %v528 = vunpack.c.h.b16 %v426
        %v529 = vunpack.c.l.b16 %v427
        %v530 = vunpack.c.h.b16 %v427
        %v531 = vunpack.c.l.b16 %v428
        %v532 = vunpack.c.h.b16 %v428
        %v533 = vunpack.c.l.b16 %v429
        %v534 = vunpack.c.h.b16 %v429
        %v535 = vunpack.c.l.b16 %v430
        %v536 = vunpack.c.h.b16 %v430
        %v537 = vunpack.c.l.b16 %v431
        %v538 = vunpack.c.h.b16 %v431
        %v539 = vunpack.c.l.b16 %v432
        %v540 = vunpack.c.h.b16 %v432
        %v541 = vunpack.c.l.b16 %v433
        %v542 = vunpack.c.h.b16 %v433
        %v543 = vunpack.c.l.b16 %v434
        %v544 = vunpack.c.h.b16 %v434
        %v545 = vunpack.c.l.b16 %v435
        %v546 = vunpack.c.h.b16 %v435
        %v547 = vunpack.c.l.b16 %v436
        %v548 = vunpack.c.h.b16 %v436
        %v549 = vunpack.c.l.b16 %v437
        %v550 = vunpack.c.h.b16 %v437
        %v551 = vunpack.c.l.b16 %v438
        %v552 = vunpack.c.h.b16 %v438
        %v553 = vunpack.c.l.b16 %v439
        %v554 = vunpack.c.h.b16 %v439
        %v555 = vunpack.c.l.b16 %v440
        %v556 = vunpack.c.h.b16 %v440
        %v557 = vunpack.c.l.b16 %v441
        %v558 = vunpack.c.h.b16 %v441
        %v559 = vunpack.c.l.b16 %v442
        %v560 = vunpack.c.h.b16 %v442
        %v561 = vpack.c.b16 %v501, %v497
        %v562 = vpack.c.b16 %v502, %v498
        %v563 = vpack.c.b16 %v503, %v499
        %v564 = vpack.c.b16 %v504, %v500
        %v565 = vpack.c.b16 %v509, %v505
        %v566 = vpack.c.b16 %v510, %v506
        %v567 = vpack.c.b16 %v511, %v507
        %v568 = vpack.c.b16 %v512, %v508
        %v569 = vpack.c.b16 %v517, %v513
        %v570 = vpack.c.b16 %v518, %v514
        %v571 = vpack.c.b16 %v519, %v515
        %v572 = vpack.c.b16 %v520, %v516
        %v573 = vpack.c.b16 %v525, %v521
        %v574 = vpack.c.b16 %v526, %v522
        %v575 = vpack.c.b16 %v527, %v523
        %v576 = vpack.c.b16 %v528, %v524
        %v577 = vpack.c.b16 %v533, %v529
        %v578 = vpack.c.b16 %v534, %v530
        %v579 = vpack.c.b16 %v535, %v531
        %v580 = vpack.c.b16 %v536, %v532
        %v581 = vpack.c.b16 %v541, %v537
        %v582 = vpack.c.b16 %v542, %v538
        %v583 = vpack.c.b16 %v543, %v539
        %v584 = vpack.c.b16 %v544, %v540
        %v585 = vpack.c.b16 %v549, %v545
        %v586 = vpack.c.b16 %v550, %v546
        %v587 = vpack.c.b16 %v551, %v547
        %v588 = vpack.c.b16 %v552, %v548
        %v589 = vpack.c.b16 %v557, %v553
        %v590 = vpack.c.b16 %v558, %v554
        %v591 = vpack.c.b16 %v559, %v555
        %v592 = vpack.c.b16 %v560, %v556
        %625 = vmatprep.subr.bf16.mxu0 %v590
        %626 = vmatpush1.bf16.msra.mxu0 %v589
        %627 = vmatprep.subr.bf16.mxu0 %v586
        %628 = vmatpush1.bf16.msra.mxu0 %v585
        %629 = vmatprep.subr.bf16.mxu0 %v582
        %630 = vmatpush1.bf16.msra.mxu0 %v581
        %631 = vmatprep.subr.bf16.mxu0 %v578
        %632 = vmatpush1.bf16.msra.mxu0 %v577
        %633 = vmatprep.subr.bf16.mxu0 %v574
        %634 = vmatpush1.bf16.msra.mxu0 %v573
        %635 = vmatprep.subr.bf16.mxu0 %v570
        %636 = vmatpush1.bf16.msra.mxu0 %v569
        %637 = vmatprep.subr.bf16.mxu0 %v566
        %638 = vmatpush1.bf16.msra.mxu0 %v565
        %639 = vmatprep.subr.bf16.mxu0 %v562
        %640 = vmatpush1.bf16.msra.mxu0 %v561
        %641 = vmatprep.subr.bf16.mxu0 0
        %642 = vmatpush2.bf16.msra.mxu0 0
        %643 = vmatprep.subr.bf16.mxu0 0
        %644 = vmatpush2.bf16.msra.mxu0 0
        %645 = vmatprep.subr.bf16.mxu0 0
        %646 = vmatpush2.bf16.msra.mxu0 0
        %647 = vmatprep.subr.bf16.mxu0 0
        %648 = vmatpush2.bf16.msra.mxu0 0
        %649 = vmatprep.subr.bf16.mxu0 0
        %650 = vmatpush2.bf16.msra.mxu0 0
        %651 = vmatprep.subr.bf16.mxu0 0
        %652 = vmatpush2.bf16.msra.mxu0 0
        %653 = vmatprep.subr.bf16.mxu0 0
        %654 = vmatpush2.bf16.msra.mxu0 0
        %655 = vmatprep.subr.bf16.mxu0 0
        %656 = vmatpush2.bf16.msra.mxu0 0
        %657 = vmatprep.mubr.bf16.mxu0 0
        %658 = vmatmul.mubr.bf16.gmra.mxu0 %v410
        %v659 = vpop.f32.mrf.mxu0
        %v660 = vadd.f32 %v448, %v659
        %v661 = vpop.f32.mrf.mxu0
        %v662 = vadd.f32 %v452, %v661
        %v663 = vpop.f32.mrf.mxu0
        %v664 = vadd.f32 %v448, %v663
        %v665 = vpop.f32.mrf.mxu0
        %v666 = vadd.f32 %v452, %v665
        %667 = vdwg.mxu0
        %668 = vmatprep.subr.bf16.mxu0 %v592
        %669 = vmatpush1.bf16.msra.mxu0 %v591
        %670 = vmatprep.subr.bf16.mxu0 %v588
        %671 = vmatpush1.bf16.msra.mxu0 %v587
        %672 = vmatprep.subr.bf16.mxu0 %v584
        %673 = vmatpush1.bf16.msra.mxu0 %v583
        %674 = vmatprep.subr.bf16.mxu0 %v580
        %675 = vmatpush1.bf16.msra.mxu0 %v579
        %676 = vmatprep.subr.bf16.mxu0 %v576
        %677 = vmatpush1.bf16.msra.mxu0 %v575
        %678 = vmatprep.subr.bf16.mxu0 %v572
        %679 = vmatpush1.bf16.msra.mxu0 %v571
        %680 = vmatprep.subr.bf16.mxu0 %v568
        %681 = vmatpush1.bf16.msra.mxu0 %v567
        %682 = vmatprep.subr.bf16.mxu0 %v564
        %683 = vmatpush1.bf16.msra.mxu0 %v563
        %684 = vmatprep.subr.bf16.mxu0 0
        %685 = vmatpush2.bf16.msra.mxu0 0
        %686 = vmatprep.subr.bf16.mxu0 0
        %687 = vmatpush2.bf16.msra.mxu0 0
        %688 = vmatprep.subr.bf16.mxu0 0
        %689 = vmatpush2.bf16.msra.mxu0 0
        %690 = vmatprep.subr.bf16.mxu0 0
        %691 = vmatpush2.bf16.msra.mxu0 0
        %692 = vmatprep.subr.bf16.mxu0 0
        %693 = vmatpush2.bf16.msra.mxu0 0
        %694 = vmatprep.subr.bf16.mxu0 0
        %695 = vmatpush2.bf16.msra.mxu0 0
        %696 = vmatprep.subr.bf16.mxu0 0
        %697 = vmatpush2.bf16.msra.mxu0 0
        %698 = vmatprep.subr.bf16.mxu0 0
        %699 = vmatpush2.bf16.msra.mxu0 0
        %700 = vmatprep.mubr.bf16.mxu0 0
        %701 = vmatmul.mubr.bf16.gmra.mxu0 %v410
        %v702 = vpop.f32.mrf.mxu0
        %v703 = vadd.f32 %v456, %v702
        %v704 = vpop.f32.mrf.mxu0
        %v705 = vadd.f32 %v460, %v704
        %v706 = vpop.f32.mrf.mxu0
        %v707 = vadd.f32 %v456, %v706
        %v708 = vpop.f32.mrf.mxu0
        %v709 = vadd.f32 %v460, %v708
        %710 = vdwg.mxu0
        %v711 = vpack.c.bf16 %v664, %v660
        %v712 = vpack.c.bf16 %v666, %v662
        %v713 = vpack.c.bf16 %v707, %v703
        %v714 = vpack.c.bf16 %v709, %v705
        %v715 = vtanh.bf16.pop %v711
        %v716 = vtanh.bf16.pop %v712
        %v717 = vtanh.bf16.pop %v713
        %v718 = vtanh.bf16.pop %v714
        %v723 = vunpack.c.l.b16 %v715
        %v724 = vunpack.c.l.b16 %v716
        %v725 = vunpack.c.l.b16 %v717
        %v726 = vunpack.c.l.b16 %v718
        %v727 = vunpack.c.h.b16 %v715
        %v728 = vunpack.c.h.b16 %v716
        %v729 = vunpack.c.h.b16 %v717
        %v730 = vunpack.c.h.b16 %v718
        %v731 = vpack.c.b16 %v724, %v723
        %v732 = vpack.c.b16 %v726, %v725
        %v733 = vpack.c.b16 %v728, %v727
        %v734 = vpack.c.b16 %v730, %v729
        %739 = vst [vmem:[%s326] sm:$0xff] %v731
        %740 = vst [vmem:[%s326 + $0x8] sm:$0xff] %v732
        %741 = vst [vmem:[%s326 + $0x10] sm:$0xff] %v733
        %742 = vst [vmem:[%s326 + $0x18] sm:$0xff] %v734
        %s743 = sand.u32 %s163, 1
        %s744 = scalar_lea.sflag [#allocation4], %s743
        %s745 = sand.u32 %s163, 1
        %s746 = smul.addr %s745, 32
        %s747 = scalar_lea.vmem [#allocation9], %s746
        // Predicated region
        $region57: #{tpu_custom_call.1} parent=39 // pred_check
          %p748 = pneg %p173
        $region58: #{tpu_custom_call.1} parent=39 // pred_check_branch
          %750 = sbr.rel (%p748) target = $region60
        $region59: #{tpu_custom_call.1} parent=39 // pred_region
          %s751 = smul.u32 2, %s26
          %s752 = smul.u32 4, %s25
          %s754 = ssub.s32 512, 512
          %755 = vsyncadd %s744, %s754
          %s756 = smul.addr %s751, 8
          %s757 = sadd.s32 %s752, %s756
          %s758 = smul.addr %s757, 64
          %s759 = scalar_lea.hbm %s5, %s758
          %s760 = sshll.u32 %s747, 4
          %s761 = int_to_ptr.vmem [resolvable:$true] %s760
          %766 = dma.vmem_to_hbm [thread:$0]  %s761, 512, %s759, %s744, 256, 512, 16
        $region60: #{tpu_custom_call.1} parent=39 // pred_fallthru
          _
      $region40: #{tpu_custom_call.1} parent=5 // pred_fallthru
        _
      %p767 = scmp.le.s32.totalorder 2, %s16
      // Predicated region
      $region61: #{tpu_custom_call.1} parent=5 // pred_check
        %p768 = pneg %p767
      $region62: #{tpu_custom_call.1} parent=5 // pred_check_branch
        %770 = sbr.rel (%p768) target = $region64
      $region63: #{tpu_custom_call.1} parent=5 // pred_region
        %s771 = ssub.s32 %s16, 2
        // Predicated region
        $region65: #{tpu_custom_call.1} parent=63 // pred_check
          %p772 = pneg %p179
        $region66: #{tpu_custom_call.1} parent=63 // pred_check_branch
          %774 = sbr.rel (%p772) target = $region68
        $region67: #{tpu_custom_call.1} parent=63 // pred_region
          %s775 = sand.u32 %s164, 1
          %s776 = scalar_lea.sflag [#allocation4], %s775
          %s777 = sand.u32 %s164, 1
          %s778 = smul.addr %s777, 32
          %s779 = scalar_lea.vmem [#allocation9], %s778
          %780 = dma.done %s776, 512
        $region68: #{tpu_custom_call.1} parent=63 // pred_fallthru
          _
      $region64: #{tpu_custom_call.1} parent=5 // pred_fallthru
        _
    $region6: #{tpu_custom_call.1} parent=1 // loop_footer
      %s20 = sadd.s32 1, %s16
    $region7: #{tpu_custom_call.1} parent=1 // loop_footer_branch
      %15 = sbr.rel target = $region3
    $region8: #{tpu_custom_call.1} parent=1 // loop_exit
      _
    %781 = vsyncpa [#allocation3], 1
    %s782 = scalar_lea.sflag [#allocation3], 1
    %783 = vsyncpa %s782, 1
    %784 = vsyncpa [#allocation6], 1
    %785 = vsyncpa [#allocation4], 1
    %s786 = scalar_lea.sflag [#allocation4], 1
    %787 = vsyncpa %s786, 1

</llo_original>
